<compile_context>
chip_gen: v7x
topology: tpu7x:2x2x1
jax: 0.10.0
libtpu: 0.0.40
codegen_flags: <defaults>
</compile_context>

<pallas_src>
import jax
import jax.numpy as jnp
from jax.experimental import pallas as pl
from jax.experimental.pallas import tpu as pltpu

N = 100          # hidden width from the PyTorch module
IN_DIM = 11
OUT_DIM = 11
FEAT = 128       # all feature dims zero-padded to one lane-dense width


def _round_up(x, m):
    return (x + m - 1) // m * m


def _pad2(a, rows, cols):
    r, c = a.shape
    return jnp.pad(a, ((0, rows - r), (0, cols - c)))


def _mish(x):
    # mish(x) = x * tanh(softplus(x)) = x - 2x / ((1 + e^x)^2 + 1)
    # 1 exp (EUP) + 1 approx reciprocal (EUP, nearly free slot) + VPU ops.
    e = jnp.exp(jnp.minimum(x, 20.0))            # clamp: exp overflow guard
    t = (1.0 + e) * (1.0 + e) + 1.0
    y = x - 2.0 * x * pl.reciprocal(t, approx=True)
    return jnp.where(x > 20.0, x, y)             # mish(x) -> x for large x


def mlp_kernel(x_ref,
               w1_ref, b1_ref, w2_ref, b2_ref, w3_ref, b3_ref,
               w4_ref, b4_ref, w5_ref, b5_ref, w6_ref, b6_ref,
               o_ref):
    h = x_ref[...]
    h = _mish(jnp.dot(h, w1_ref[...], preferred_element_type=jnp.float32) + b1_ref[...])
    h = _mish(jnp.dot(h, w2_ref[...], preferred_element_type=jnp.float32) + b2_ref[...])
    h = _mish(jnp.dot(h, w3_ref[...], preferred_element_type=jnp.float32) + b3_ref[...])
    h = _mish(jnp.dot(h, w4_ref[...], preferred_element_type=jnp.float32) + b4_ref[...])
    h = _mish(jnp.dot(h, w5_ref[...], preferred_element_type=jnp.float32) + b5_ref[...])
    h = jnp.dot(h, w6_ref[...], preferred_element_type=jnp.float32) + b6_ref[...]
    o_ref[...] = h.astype(o_ref.dtype)


def mlp_forward(x, params, tb=512):
    """x: (B, 11) float32. params: list of 6 (W, b), W stored as (in, out)."""
    B = x.shape[0]

    # --- lane-dense zero padding (wrapper-side layout plumbing) -------------
    x_p = _pad2(x.astype(jnp.float32), _round_up(B, 8), FEAT)
    flat = []
    for w, b in params:
        flat.append(_pad2(w.astype(jnp.float32), FEAT, FEAT))
        flat.append(_pad2(b.reshape(1, -1).astype(jnp.float32), 1, FEAT))

    # --- batch tiling -------------------------------------------------------
    TB = min(tb, x_p.shape[0])                 # large tile for real batches,
    Bp = _round_up(x_p.shape[0], TB)           # shrink gracefully for tiny B
    if Bp != x_p.shape[0]:
        x_p = jnp.pad(x_p, ((0, Bp - x_p.shape[0]), (0, 0)))
    grid = (Bp // TB,)

    act_spec = pl.BlockSpec((TB, FEAT), lambda i: (i, 0))     # streams
    w_spec = pl.BlockSpec((FEAT, FEAT), lambda i: (0, 0))     # resident
    b_spec = pl.BlockSpec((1, FEAT), lambda i: (0, 0))        # resident
    in_specs = [act_spec] + [w_spec, b_spec] * 6

    cost = pl.CostEstimate(
        flops=2 * B * (IN_DIM * N + 4 * N * N + N * OUT_DIM),
        transcendentals=5 * B * N,
        bytes_accessed=4 * (B * IN_DIM + B * OUT_DIM + 6 * FEAT * FEAT + 6 * FEAT),
    )

    out = pl.pallas_call(
        mlp_kernel,
        out_shape=jax.ShapeDtypeStruct((Bp, FEAT), jnp.float32),
        grid=grid,
        in_specs=in_specs,
        out_specs=act_spec,
        compiler_params=pltpu.CompilerParams(
            dimension_semantics=("parallel",),   # 2x on v7x (2 TCs); no-op v5e/v6e
        ),
        cost_estimate=cost,
    )(x_p, *flat)

    return out[:B, :OUT_DIM]


def init_params(key):
    """Deterministic init matching PyTorch Linear default: U(-1/sqrt(fan_in), +)."""
    dims = [IN_DIM, N, N, N, N, N, OUT_DIM]
    params = []
    for i in range(6):
        fan_in, fan_out = dims[i], dims[i + 1]
        key, kw, kb = jax.random.split(key, 3)
        bound = 1.0 / jnp.sqrt(fan_in)
        w = jax.random.uniform(kw, (fan_in, fan_out), jnp.float32, -bound, bound)
        b = jax.random.uniform(kb, (fan_out,), jnp.float32, -bound, bound)
        params.append((w, b))
    return params


def reference_forward(x, params):
    h = x
    for i, (w, b) in enumerate(params):
        h = h @ w + b
        if i < 5:
            h = h * jnp.tanh(jax.nn.softplus(h))
    return h


if __name__ == "__main__":
    key = jax.random.PRNGKey(0)
    key, kx = jax.random.split(key)

    batch = 8
    x = jax.random.normal(kx, (batch, IN_DIM), jnp.float32)
    params = init_params(key)

    out = mlp_forward(x, params)
    out = jax.block_until_ready(out)

    ref = reference_forward(x, params)
    assert out.shape == (batch, OUT_DIM)
    # Slightly looser tolerance: mish uses the EUP approx reciprocal.
    assert jnp.allclose(out, ref, atol=5e-3, rtol=5e-3), "mismatch vs JAX reference"

    print("KERNEL_OK")
</pallas_src>

<mosaic_0001>
module attributes {stable_mosaic.version = 11 : i64} {
  func.func @mlp_kernel(%arg0: i32, %arg1: memref<8x128xf32, #tpu.memory_space<vmem>>, %arg2: memref<128x128xf32, #tpu.memory_space<vmem>>, %arg3: memref<1x128xf32, #tpu.memory_space<vmem>>, %arg4: memref<128x128xf32, #tpu.memory_space<vmem>>, %arg5: memref<1x128xf32, #tpu.memory_space<vmem>>, %arg6: memref<128x128xf32, #tpu.memory_space<vmem>>, %arg7: memref<1x128xf32, #tpu.memory_space<vmem>>, %arg8: memref<128x128xf32, #tpu.memory_space<vmem>>, %arg9: memref<1x128xf32, #tpu.memory_space<vmem>>, %arg10: memref<128x128xf32, #tpu.memory_space<vmem>>, %arg11: memref<1x128xf32, #tpu.memory_space<vmem>>, %arg12: memref<128x128xf32, #tpu.memory_space<vmem>>, %arg13: memref<1x128xf32, #tpu.memory_space<vmem>>, %arg14: memref<8x128xf32, #tpu.memory_space<vmem>>) attributes {dimension_semantics = [#tpu.dimension_semantics<parallel>], iteration_bounds = array<i64: 1>, scalar_prefetch = 0 : i64, scratch_operands = 0 : i64, tpu.core_type = #tpu.core_type<tc>, window_params = [{transform_indices = @transform_0, window_bounds = array<i64: 8, 128>}, {pipeline_mode = #tpu.pipeline_mode<synchronous>, transform_indices = @transform_1, window_bounds = array<i64: 128, 128>}, {pipeline_mode = #tpu.pipeline_mode<synchronous>, transform_indices = @transform_2, window_bounds = array<i64: 1, 128>}, {pipeline_mode = #tpu.pipeline_mode<synchronous>, transform_indices = @transform_3, window_bounds = array<i64: 128, 128>}, {pipeline_mode = #tpu.pipeline_mode<synchronous>, transform_indices = @transform_4, window_bounds = array<i64: 1, 128>}, {pipeline_mode = #tpu.pipeline_mode<synchronous>, transform_indices = @transform_5, window_bounds = array<i64: 128, 128>}, {pipeline_mode = #tpu.pipeline_mode<synchronous>, transform_indices = @transform_6, window_bounds = array<i64: 1, 128>}, {pipeline_mode = #tpu.pipeline_mode<synchronous>, transform_indices = @transform_7, window_bounds = array<i64: 128, 128>}, {pipeline_mode = #tpu.pipeline_mode<synchronous>, transform_indices = @transform_8, window_bounds = array<i64: 1, 128>}, {pipeline_mode = #tpu.pipeline_mode<synchronous>, transform_indices = @transform_9, window_bounds = array<i64: 128, 128>}, {pipeline_mode = #tpu.pipeline_mode<synchronous>, transform_indices = @transform_10, window_bounds = array<i64: 1, 128>}, {pipeline_mode = #tpu.pipeline_mode<synchronous>, transform_indices = @transform_11, window_bounds = array<i64: 128, 128>}, {pipeline_mode = #tpu.pipeline_mode<synchronous>, transform_indices = @transform_12, window_bounds = array<i64: 1, 128>}, {transform_indices = @transform_13, window_bounds = array<i64: 8, 128>}]} {
    %c0 = arith.constant 0 : index
    %c0_0 = arith.constant 0 : index
    %0 = vector.load %arg1[%c0, %c0_0] : memref<8x128xf32, #tpu.memory_space<vmem>>, vector<8x128xf32>
    %c0_1 = arith.constant 0 : index
    %c0_2 = arith.constant 0 : index
    %1 = vector.load %arg2[%c0_1, %c0_2] : memref<128x128xf32, #tpu.memory_space<vmem>>, vector<128x128xf32>
    %cst = arith.constant dense<0.000000e+00> : vector<8x128xf32>
    %2 = tpu.matmul %0, %1, %cst {dimension_numbers = #tpu.dot_dimension_numbers<[1], [0], [0], [1], [0, 0, 1, 1], [], []>} : vector<8x128xf32>, vector<128x128xf32>, vector<8x128xf32> -> vector<8x128xf32>
    %c0_3 = arith.constant 0 : index
    %c0_4 = arith.constant 0 : index
    %3 = vector.load %arg3[%c0_3, %c0_4] : memref<1x128xf32, #tpu.memory_space<vmem>>, vector<1x128xf32>
    %4 = vector.broadcast %3 : vector<1x128xf32> to vector<8x128xf32>
    %5 = arith.addf %2, %4 : vector<8x128xf32>
    %cst_5 = arith.constant 2.000000e+01 : f32
    %6 = vector.broadcast %cst_5 : f32 to vector<8x128xf32>
    %7 = arith.minimumf %5, %6 : vector<8x128xf32>
    %8 = math.exp %7 : vector<8x128xf32>
    %cst_6 = arith.constant 1.000000e+00 : f32
    %9 = vector.broadcast %cst_6 : f32 to vector<8x128xf32>
    %10 = arith.addf %9, %8 : vector<8x128xf32>
    %cst_7 = arith.constant 1.000000e+00 : f32
    %11 = vector.broadcast %cst_7 : f32 to vector<8x128xf32>
    %12 = arith.addf %11, %8 : vector<8x128xf32>
    %13 = arith.mulf %10, %12 : vector<8x128xf32>
    %cst_8 = arith.constant 1.000000e+00 : f32
    %14 = vector.broadcast %cst_8 : f32 to vector<8x128xf32>
    %15 = arith.addf %13, %14 : vector<8x128xf32>
    %cst_9 = arith.constant 2.000000e+00 : f32
    %16 = vector.broadcast %cst_9 : f32 to vector<8x128xf32>
    %17 = arith.mulf %16, %5 : vector<8x128xf32>
    %18 = tpu.reciprocal %15 {approx = true} : vector<8x128xf32> -> vector<8x128xf32>
    %19 = arith.mulf %17, %18 : vector<8x128xf32>
    %20 = arith.subf %5, %19 : vector<8x128xf32>
    %cst_10 = arith.constant 2.000000e+01 : f32
    %21 = vector.broadcast %cst_10 : f32 to vector<8x128xf32>
    %22 = arith.cmpf ogt, %5, %21 : vector<8x128xf32>
    %23 = arith.select %22, %5, %20 : vector<8x128xi1>, vector<8x128xf32>
    %c0_11 = arith.constant 0 : index
    %c0_12 = arith.constant 0 : index
    %24 = vector.load %arg4[%c0_11, %c0_12] : memref<128x128xf32, #tpu.memory_space<vmem>>, vector<128x128xf32>
    %cst_13 = arith.constant dense<0.000000e+00> : vector<8x128xf32>
    %25 = tpu.matmul %23, %24, %cst_13 {dimension_numbers = #tpu.dot_dimension_numbers<[1], [0], [0], [1], [0, 0, 1, 1], [], []>} : vector<8x128xf32>, vector<128x128xf32>, vector<8x128xf32> -> vector<8x128xf32>
    %c0_14 = arith.constant 0 : index
    %c0_15 = arith.constant 0 : index
    %26 = vector.load %arg5[%c0_14, %c0_15] : memref<1x128xf32, #tpu.memory_space<vmem>>, vector<1x128xf32>
    %27 = vector.broadcast %26 : vector<1x128xf32> to vector<8x128xf32>
    %28 = arith.addf %25, %27 : vector<8x128xf32>
    %cst_16 = arith.constant 2.000000e+01 : f32
    %29 = vector.broadcast %cst_16 : f32 to vector<8x128xf32>
    %30 = arith.minimumf %28, %29 : vector<8x128xf32>
    %31 = math.exp %30 : vector<8x128xf32>
    %cst_17 = arith.constant 1.000000e+00 : f32
    %32 = vector.broadcast %cst_17 : f32 to vector<8x128xf32>
    %33 = arith.addf %32, %31 : vector<8x128xf32>
    %cst_18 = arith.constant 1.000000e+00 : f32
    %34 = vector.broadcast %cst_18 : f32 to vector<8x128xf32>
    %35 = arith.addf %34, %31 : vector<8x128xf32>
    %36 = arith.mulf %33, %35 : vector<8x128xf32>
    %cst_19 = arith.constant 1.000000e+00 : f32
    %37 = vector.broadcast %cst_19 : f32 to vector<8x128xf32>
    %38 = arith.addf %36, %37 : vector<8x128xf32>
    %cst_20 = arith.constant 2.000000e+00 : f32
    %39 = vector.broadcast %cst_20 : f32 to vector<8x128xf32>
    %40 = arith.mulf %39, %28 : vector<8x128xf32>
    %41 = tpu.reciprocal %38 {approx = true} : vector<8x128xf32> -> vector<8x128xf32>
    %42 = arith.mulf %40, %41 : vector<8x128xf32>
    %43 = arith.subf %28, %42 : vector<8x128xf32>
    %cst_21 = arith.constant 2.000000e+01 : f32
    %44 = vector.broadcast %cst_21 : f32 to vector<8x128xf32>
    %45 = arith.cmpf ogt, %28, %44 : vector<8x128xf32>
    %46 = arith.select %45, %28, %43 : vector<8x128xi1>, vector<8x128xf32>
    %c0_22 = arith.constant 0 : index
    %c0_23 = arith.constant 0 : index
    %47 = vector.load %arg6[%c0_22, %c0_23] : memref<128x128xf32, #tpu.memory_space<vmem>>, vector<128x128xf32>
    %cst_24 = arith.constant dense<0.000000e+00> : vector<8x128xf32>
    %48 = tpu.matmul %46, %47, %cst_24 {dimension_numbers = #tpu.dot_dimension_numbers<[1], [0], [0], [1], [0, 0, 1, 1], [], []>} : vector<8x128xf32>, vector<128x128xf32>, vector<8x128xf32> -> vector<8x128xf32>
    %c0_25 = arith.constant 0 : index
    %c0_26 = arith.constant 0 : index
    %49 = vector.load %arg7[%c0_25, %c0_26] : memref<1x128xf32, #tpu.memory_space<vmem>>, vector<1x128xf32>
    %50 = vector.broadcast %49 : vector<1x128xf32> to vector<8x128xf32>
    %51 = arith.addf %48, %50 : vector<8x128xf32>
    %cst_27 = arith.constant 2.000000e+01 : f32
    %52 = vector.broadcast %cst_27 : f32 to vector<8x128xf32>
    %53 = arith.minimumf %51, %52 : vector<8x128xf32>
    %54 = math.exp %53 : vector<8x128xf32>
    %cst_28 = arith.constant 1.000000e+00 : f32
    %55 = vector.broadcast %cst_28 : f32 to vector<8x128xf32>
    %56 = arith.addf %55, %54 : vector<8x128xf32>
    %cst_29 = arith.constant 1.000000e+00 : f32
    %57 = vector.broadcast %cst_29 : f32 to vector<8x128xf32>
    %58 = arith.addf %57, %54 : vector<8x128xf32>
    %59 = arith.mulf %56, %58 : vector<8x128xf32>
    %cst_30 = arith.constant 1.000000e+00 : f32
    %60 = vector.broadcast %cst_30 : f32 to vector<8x128xf32>
    %61 = arith.addf %59, %60 : vector<8x128xf32>
    %cst_31 = arith.constant 2.000000e+00 : f32
    %62 = vector.broadcast %cst_31 : f32 to vector<8x128xf32>
    %63 = arith.mulf %62, %51 : vector<8x128xf32>
    %64 = tpu.reciprocal %61 {approx = true} : vector<8x128xf32> -> vector<8x128xf32>
    %65 = arith.mulf %63, %64 : vector<8x128xf32>
    %66 = arith.subf %51, %65 : vector<8x128xf32>
    %cst_32 = arith.constant 2.000000e+01 : f32
    %67 = vector.broadcast %cst_32 : f32 to vector<8x128xf32>
    %68 = arith.cmpf ogt, %51, %67 : vector<8x128xf32>
    %69 = arith.select %68, %51, %66 : vector<8x128xi1>, vector<8x128xf32>
    %c0_33 = arith.constant 0 : index
    %c0_34 = arith.constant 0 : index
    %70 = vector.load %arg8[%c0_33, %c0_34] : memref<128x128xf32, #tpu.memory_space<vmem>>, vector<128x128xf32>
    %cst_35 = arith.constant dense<0.000000e+00> : vector<8x128xf32>
    %71 = tpu.matmul %69, %70, %cst_35 {dimension_numbers = #tpu.dot_dimension_numbers<[1], [0], [0], [1], [0, 0, 1, 1], [], []>} : vector<8x128xf32>, vector<128x128xf32>, vector<8x128xf32> -> vector<8x128xf32>
    %c0_36 = arith.constant 0 : index
    %c0_37 = arith.constant 0 : index
    %72 = vector.load %arg9[%c0_36, %c0_37] : memref<1x128xf32, #tpu.memory_space<vmem>>, vector<1x128xf32>
    %73 = vector.broadcast %72 : vector<1x128xf32> to vector<8x128xf32>
    %74 = arith.addf %71, %73 : vector<8x128xf32>
    %cst_38 = arith.constant 2.000000e+01 : f32
    %75 = vector.broadcast %cst_38 : f32 to vector<8x128xf32>
    %76 = arith.minimumf %74, %75 : vector<8x128xf32>
    %77 = math.exp %76 : vector<8x128xf32>
    %cst_39 = arith.constant 1.000000e+00 : f32
    %78 = vector.broadcast %cst_39 : f32 to vector<8x128xf32>
    %79 = arith.addf %78, %77 : vector<8x128xf32>
    %cst_40 = arith.constant 1.000000e+00 : f32
    %80 = vector.broadcast %cst_40 : f32 to vector<8x128xf32>
    %81 = arith.addf %80, %77 : vector<8x128xf32>
    %82 = arith.mulf %79, %81 : vector<8x128xf32>
    %cst_41 = arith.constant 1.000000e+00 : f32
    %83 = vector.broadcast %cst_41 : f32 to vector<8x128xf32>
    %84 = arith.addf %82, %83 : vector<8x128xf32>
    %cst_42 = arith.constant 2.000000e+00 : f32
    %85 = vector.broadcast %cst_42 : f32 to vector<8x128xf32>
    %86 = arith.mulf %85, %74 : vector<8x128xf32>
    %87 = tpu.reciprocal %84 {approx = true} : vector<8x128xf32> -> vector<8x128xf32>
    %88 = arith.mulf %86, %87 : vector<8x128xf32>
    %89 = arith.subf %74, %88 : vector<8x128xf32>
    %cst_43 = arith.constant 2.000000e+01 : f32
    %90 = vector.broadcast %cst_43 : f32 to vector<8x128xf32>
    %91 = arith.cmpf ogt, %74, %90 : vector<8x128xf32>
    %92 = arith.select %91, %74, %89 : vector<8x128xi1>, vector<8x128xf32>
    %c0_44 = arith.constant 0 : index
    %c0_45 = arith.constant 0 : index
    %93 = vector.load %arg10[%c0_44, %c0_45] : memref<128x128xf32, #tpu.memory_space<vmem>>, vector<128x128xf32>
    %cst_46 = arith.constant dense<0.000000e+00> : vector<8x128xf32>
    %94 = tpu.matmul %92, %93, %cst_46 {dimension_numbers = #tpu.dot_dimension_numbers<[1], [0], [0], [1], [0, 0, 1, 1], [], []>} : vector<8x128xf32>, vector<128x128xf32>, vector<8x128xf32> -> vector<8x128xf32>
    %c0_47 = arith.constant 0 : index
    %c0_48 = arith.constant 0 : index
    %95 = vector.load %arg11[%c0_47, %c0_48] : memref<1x128xf32, #tpu.memory_space<vmem>>, vector<1x128xf32>
    %96 = vector.broadcast %95 : vector<1x128xf32> to vector<8x128xf32>
    %97 = arith.addf %94, %96 : vector<8x128xf32>
    %cst_49 = arith.constant 2.000000e+01 : f32
    %98 = vector.broadcast %cst_49 : f32 to vector<8x128xf32>
    %99 = arith.minimumf %97, %98 : vector<8x128xf32>
    %100 = math.exp %99 : vector<8x128xf32>
    %cst_50 = arith.constant 1.000000e+00 : f32
    %101 = vector.broadcast %cst_50 : f32 to vector<8x128xf32>
    %102 = arith.addf %101, %100 : vector<8x128xf32>
    %cst_51 = arith.constant 1.000000e+00 : f32
    %103 = vector.broadcast %cst_51 : f32 to vector<8x128xf32>
    %104 = arith.addf %103, %100 : vector<8x128xf32>
    %105 = arith.mulf %102, %104 : vector<8x128xf32>
    %cst_52 = arith.constant 1.000000e+00 : f32
    %106 = vector.broadcast %cst_52 : f32 to vector<8x128xf32>
    %107 = arith.addf %105, %106 : vector<8x128xf32>
    %cst_53 = arith.constant 2.000000e+00 : f32
    %108 = vector.broadcast %cst_53 : f32 to vector<8x128xf32>
    %109 = arith.mulf %108, %97 : vector<8x128xf32>
    %110 = tpu.reciprocal %107 {approx = true} : vector<8x128xf32> -> vector<8x128xf32>
    %111 = arith.mulf %109, %110 : vector<8x128xf32>
    %112 = arith.subf %97, %111 : vector<8x128xf32>
    %cst_54 = arith.constant 2.000000e+01 : f32
    %113 = vector.broadcast %cst_54 : f32 to vector<8x128xf32>
    %114 = arith.cmpf ogt, %97, %113 : vector<8x128xf32>
    %115 = arith.select %114, %97, %112 : vector<8x128xi1>, vector<8x128xf32>
    %c0_55 = arith.constant 0 : index
    %c0_56 = arith.constant 0 : index
    %116 = vector.load %arg12[%c0_55, %c0_56] : memref<128x128xf32, #tpu.memory_space<vmem>>, vector<128x128xf32>
    %cst_57 = arith.constant dense<0.000000e+00> : vector<8x128xf32>
    %117 = tpu.matmul %115, %116, %cst_57 {dimension_numbers = #tpu.dot_dimension_numbers<[1], [0], [0], [1], [0, 0, 1, 1], [], []>} : vector<8x128xf32>, vector<128x128xf32>, vector<8x128xf32> -> vector<8x128xf32>
    %c0_58 = arith.constant 0 : index
    %c0_59 = arith.constant 0 : index
    %118 = vector.load %arg13[%c0_58, %c0_59] : memref<1x128xf32, #tpu.memory_space<vmem>>, vector<1x128xf32>
    %119 = vector.broadcast %118 : vector<1x128xf32> to vector<8x128xf32>
    %120 = arith.addf %117, %119 : vector<8x128xf32>
    %c0_60 = arith.constant 0 : index
    %c0_61 = arith.constant 0 : index
    %121 = vector.load %arg14[%c0_60, %c0_61] : memref<8x128xf32, #tpu.memory_space<vmem>>, vector<8x128xf32>
    tpu.vector_store %arg14[%c0_60, %c0_61], %120 {strides = array<i32>} : memref<8x128xf32, #tpu.memory_space<vmem>>, vector<8x128xf32>,
    return
  }
  func.func @transform_0(%arg0: i32) -> (i32, i32) {
    %c0_i32 = arith.constant 0 : i32
    %c0_i32_0 = arith.constant 0 : i32
    return %arg0, %c0_i32 : i32, i32
  }
  func.func @transform_1(%arg0: i32) -> (i32, i32) {
    %c0_i32 = arith.constant 0 : i32
    %c0_i32_0 = arith.constant 0 : i32
    %c0_i32_1 = arith.constant 0 : i32
    return %c0_i32, %c0_i32_0 : i32, i32
  }
  func.func @transform_2(%arg0: i32) -> (i32, i32) {
    %c0_i32 = arith.constant 0 : i32
    %c0_i32_0 = arith.constant 0 : i32
    %c0_i32_1 = arith.constant 0 : i32
    return %c0_i32, %c0_i32_0 : i32, i32
  }
  func.func @transform_3(%arg0: i32) -> (i32, i32) {
    %c0_i32 = arith.constant 0 : i32
    %c0_i32_0 = arith.constant 0 : i32
    %c0_i32_1 = arith.constant 0 : i32
    return %c0_i32, %c0_i32_0 : i32, i32
  }
  func.func @transform_4(%arg0: i32) -> (i32, i32) {
    %c0_i32 = arith.constant 0 : i32
    %c0_i32_0 = arith.constant 0 : i32
    %c0_i32_1 = arith.constant 0 : i32
    return %c0_i32, %c0_i32_0 : i32, i32
  }
  func.func @transform_5(%arg0: i32) -> (i32, i32) {
    %c0_i32 = arith.constant 0 : i32
    %c0_i32_0 = arith.constant 0 : i32
    %c0_i32_1 = arith.constant 0 : i32
    return %c0_i32, %c0_i32_0 : i32, i32
  }
  func.func @transform_6(%arg0: i32) -> (i32, i32) {
    %c0_i32 = arith.constant 0 : i32
    %c0_i32_0 = arith.constant 0 : i32
    %c0_i32_1 = arith.constant 0 : i32
    return %c0_i32, %c0_i32_0 : i32, i32
  }
  func.func @transform_7(%arg0: i32) -> (i32, i32) {
    %c0_i32 = arith.constant 0 : i32
    %c0_i32_0 = arith.constant 0 : i32
    %c0_i32_1 = arith.constant 0 : i32
    return %c0_i32, %c0_i32_0 : i32, i32
  }
  func.func @transform_8(%arg0: i32) -> (i32, i32) {
    %c0_i32 = arith.constant 0 : i32
    %c0_i32_0 = arith.constant 0 : i32
    %c0_i32_1 = arith.constant 0 : i32
    return %c0_i32, %c0_i32_0 : i32, i32
  }
  func.func @transform_9(%arg0: i32) -> (i32, i32) {
    %c0_i32 = arith.constant 0 : i32
    %c0_i32_0 = arith.constant 0 : i32
    %c0_i32_1 = arith.constant 0 : i32
    return %c0_i32, %c0_i32_0 : i32, i32
  }
  func.func @transform_10(%arg0: i32) -> (i32, i32) {
    %c0_i32 = arith.constant 0 : i32
    %c0_i32_0 = arith.constant 0 : i32
    %c0_i32_1 = arith.constant 0 : i32
    return %c0_i32, %c0_i32_0 : i32, i32
  }
  func.func @transform_11(%arg0: i32) -> (i32, i32) {
    %c0_i32 = arith.constant 0 : i32
    %c0_i32_0 = arith.constant 0 : i32
    %c0_i32_1 = arith.constant 0 : i32
    return %c0_i32, %c0_i32_0 : i32, i32
  }
  func.func @transform_12(%arg0: i32) -> (i32, i32) {
    %c0_i32 = arith.constant 0 : i32
    %c0_i32_0 = arith.constant 0 : i32
    %c0_i32_1 = arith.constant 0 : i32
    return %c0_i32, %c0_i32_0 : i32, i32
  }
  func.func @transform_13(%arg0: i32) -> (i32, i32) {
    %c0_i32 = arith.constant 0 : i32
    %c0_i32_0 = arith.constant 0 : i32
    return %arg0, %c0_i32 : i32, i32
  }
}

</mosaic_0001>

<llo_original>
// kernel: tpu_custom_call.1
$region0: #{tpu_custom_call.1}
  #allocation0 [shape = 'u32[]', space=smem, size = 0x4, offset = 0x4, fixed_abs, tag = 'smem constant byte address 0x4 - core index']
  #allocation1 [shape = 'u32[144,128]{1,0:T(1,128)}', space=vmem, size = 0x12000, scoped, tag = 'internal scratch']
  %s0 = inlined_call_operand.hbm [shape: f32[8,128], index: 0, kind: input, shape index: {}]
  %s1 = inlined_call_operand.hbm [shape: f32[128,128], index: 1, kind: input, shape index: {}]
  %s2 = inlined_call_operand.vmem [shape: f32[1,128], index: 2, kind: input, shape index: {}]
  %s3 = inlined_call_operand.hbm [shape: f32[128,128], index: 3, kind: input, shape index: {}]
  %s4 = inlined_call_operand.vmem [shape: f32[1,128], index: 4, kind: input, shape index: {}]
  %s5 = inlined_call_operand.hbm [shape: f32[128,128], index: 5, kind: input, shape index: {}]
  %s6 = inlined_call_operand.vmem [shape: f32[1,128], index: 6, kind: input, shape index: {}]
  %s7 = inlined_call_operand.hbm [shape: f32[128,128], index: 7, kind: input, shape index: {}]
  %s8 = inlined_call_operand.vmem [shape: f32[1,128], index: 8, kind: input, shape index: {}]
  %s9 = inlined_call_operand.hbm [shape: f32[128,128], index: 9, kind: input, shape index: {}]
  %s10 = inlined_call_operand.vmem [shape: f32[1,128], index: 10, kind: input, shape index: {}]
  %s11 = inlined_call_operand.hbm [shape: f32[128,128], index: 11, kind: input, shape index: {}]
  %s12 = inlined_call_operand.vmem [shape: f32[1,128], index: 12, kind: input, shape index: {}]
  %s13 = inlined_call_operand.hbm [shape: f32[8,128], index: 13, kind: output, shape index: {}]
  %s14 = sld [smem:[#allocation0]]
  $region90: #{tpu_custom_call.1} parent=0
    _
  %s16 = ssub.s32 1, %s14
  %s17 = scalar_select 0, %s16, %s14
  $region1: #{tpu_custom_call.1} parent=0
    #allocation2 [shape = 'u8[4096]{0}', space=vmem, size = 0x1000, scoped, tag = 'input window, operand 0, single buffered']
    #allocation3 [shape = 's32[1]{0}', space=sflag, size = 0x4, scoped, tag = 'scoped memory for tpu_custom_call.1']
    #allocation4 [shape = 's32[1]{0}', space=sflag, size = 0x4, scoped, tag = 'scoped memory for tpu_custom_call.1']
    #allocation5 [shape = 'u8[65536]{0}', space=vmem, size = 0x10000, scoped, tag = 'input window, operand 1, single buffered']
    #allocation6 [shape = 's32[1]{0}', space=sflag, size = 0x4, scoped, tag = 'scoped memory for tpu_custom_call.1']
    #allocation7 [shape = 'u8[65536]{0}', space=vmem, size = 0x10000, scoped, tag = 'input window, operand 3, single buffered']
    #allocation8 [shape = 'u8[65536]{0}', space=vmem, size = 0x10000, scoped, tag = 'input window, operand 5, single buffered']
    #allocation9 [shape = 's32[1]{0}', space=sflag, size = 0x4, scoped, tag = 'scoped memory for tpu_custom_call.1']
    #allocation10 [shape = 'u8[65536]{0}', space=vmem, size = 0x10000, scoped, tag = 'input window, operand 7, single buffered']
    #allocation11 [shape = 'u8[65536]{0}', space=vmem, size = 0x10000, scoped, tag = 'input window, operand 9, single buffered']
    #allocation12 [shape = 's32[1]{0}', space=sflag, size = 0x4, scoped, tag = 'scoped memory for tpu_custom_call.1']
    #allocation13 [shape = 'u8[65536]{0}', space=vmem, size = 0x10000, scoped, tag = 'input window, operand 11, single buffered']
    #allocation14 [shape = 'u8[4096]{0}', space=vmem, size = 0x1000, scoped, tag = 'output window, operand 0, single buffered']
    %18 = vsyncpa [#allocation3], 0
    %19 = vsyncpa [#allocation6], 0
    %20 = vsyncpa [#allocation9], 0
    %21 = vsyncpa [#allocation12], 0
    %22 = vsyncpa [#allocation4], 0
    // Predicated region
    $region2: #{tpu_custom_call.1} parent=1 // pred_check
      _
    $region3: #{tpu_custom_call.1} parent=1 // pred_check_branch
      %24 = sbr.rel (0) target = $region5
    $region4: #{tpu_custom_call.1} parent=1 // pred_region
      %s26 = ssub.s32 128, 128
      %27 = vsyncadd [#allocation3], %s26
      %s29 = sshll.u32 [#allocation2], 4
      %s30 = int_to_ptr.vmem [resolvable:$true] %s29
      %32 = dma.hbm_to_vmem [thread:$0]  %s0, 128, %s30, [#allocation3]
    $region5: #{tpu_custom_call.1} parent=1 // pred_fallthru
      _
    // Predicated region
    $region6: #{tpu_custom_call.1} parent=1 // pred_check
      _
    $region7: #{tpu_custom_call.1} parent=1 // pred_check_branch
      %34 = sbr.rel (0) target = $region9
    $region8: #{tpu_custom_call.1} parent=1 // pred_region
      %s36 = ssub.s32 2048, 2048
      %37 = vsyncadd [#allocation6], %s36
      %s38 = sshll.u32 [#allocation5], 4
      %s39 = int_to_ptr.vmem [resolvable:$true] %s38
      %44 = dma.hbm_to_vmem [thread:$0]  %s1, 2048, %s39, [#allocation6], 128, 128, 8
    $region9: #{tpu_custom_call.1} parent=1 // pred_fallthru
      _
    // Predicated region
    $region10: #{tpu_custom_call.1} parent=1 // pred_check
      _
    $region11: #{tpu_custom_call.1} parent=1 // pred_check_branch
      %46 = sbr.rel (0) target = $region13
    $region12: #{tpu_custom_call.1} parent=1 // pred_region
      _
    $region13: #{tpu_custom_call.1} parent=1 // pred_fallthru
      _
    // Predicated region
    $region14: #{tpu_custom_call.1} parent=1 // pred_check
      _
    $region15: #{tpu_custom_call.1} parent=1 // pred_check_branch
      %48 = sbr.rel (0) target = $region17
    $region16: #{tpu_custom_call.1} parent=1 // pred_region
      %s50 = ssub.s32 2048, 2048
      %51 = vsyncadd [#allocation6], %s50
      %s52 = sshll.u32 [#allocation7], 4
      %s53 = int_to_ptr.vmem [resolvable:$true] %s52
      %58 = dma.hbm_to_vmem [thread:$0]  %s3, 2048, %s53, [#allocation6], 128, 128, 8
    $region17: #{tpu_custom_call.1} parent=1 // pred_fallthru
      _
    // Predicated region
    $region18: #{tpu_custom_call.1} parent=1 // pred_check
      _
    $region19: #{tpu_custom_call.1} parent=1 // pred_check_branch
      %60 = sbr.rel (0) target = $region21
    $region20: #{tpu_custom_call.1} parent=1 // pred_region
      _
    $region21: #{tpu_custom_call.1} parent=1 // pred_fallthru
      _
    // Predicated region
    $region22: #{tpu_custom_call.1} parent=1 // pred_check
      _
    $region23: #{tpu_custom_call.1} parent=1 // pred_check_branch
      %62 = sbr.rel (0) target = $region25
    $region24: #{tpu_custom_call.1} parent=1 // pred_region
      %s64 = ssub.s32 2048, 2048
      %65 = vsyncadd [#allocation9], %s64
      %s66 = sshll.u32 [#allocation8], 4
      %s67 = int_to_ptr.vmem [resolvable:$true] %s66
      %72 = dma.hbm_to_vmem [thread:$0]  %s5, 2048, %s67, [#allocation9], 128, 128, 8
    $region25: #{tpu_custom_call.1} parent=1 // pred_fallthru
      _
    // Predicated region
    $region26: #{tpu_custom_call.1} parent=1 // pred_check
      _
    $region27: #{tpu_custom_call.1} parent=1 // pred_check_branch
      %74 = sbr.rel (0) target = $region29
    $region28: #{tpu_custom_call.1} parent=1 // pred_region
      _
    $region29: #{tpu_custom_call.1} parent=1 // pred_fallthru
      _
    // Predicated region
    $region30: #{tpu_custom_call.1} parent=1 // pred_check
      _
    $region31: #{tpu_custom_call.1} parent=1 // pred_check_branch
      %76 = sbr.rel (0) target = $region33
    $region32: #{tpu_custom_call.1} parent=1 // pred_region
      %s78 = ssub.s32 2048, 2048
      %79 = vsyncadd [#allocation9], %s78
      %s80 = sshll.u32 [#allocation10], 4
      %s81 = int_to_ptr.vmem [resolvable:$true] %s80
      %86 = dma.hbm_to_vmem [thread:$0]  %s7, 2048, %s81, [#allocation9], 128, 128, 8
    $region33: #{tpu_custom_call.1} parent=1 // pred_fallthru
      _
    // Predicated region
    $region34: #{tpu_custom_call.1} parent=1 // pred_check
      _
    $region35: #{tpu_custom_call.1} parent=1 // pred_check_branch
      %88 = sbr.rel (0) target = $region37
    $region36: #{tpu_custom_call.1} parent=1 // pred_region
      _
    $region37: #{tpu_custom_call.1} parent=1 // pred_fallthru
      _
    // Predicated region
    $region38: #{tpu_custom_call.1} parent=1 // pred_check
      _
    $region39: #{tpu_custom_call.1} parent=1 // pred_check_branch
      %90 = sbr.rel (0) target = $region41
    $region40: #{tpu_custom_call.1} parent=1 // pred_region
      %s92 = ssub.s32 2048, 2048
      %93 = vsyncadd [#allocation12], %s92
      %s94 = sshll.u32 [#allocation11], 4
      %s95 = int_to_ptr.vmem [resolvable:$true] %s94
      %100 = dma.hbm_to_vmem [thread:$0]  %s9, 2048, %s95, [#allocation12], 128, 128, 8
    $region41: #{tpu_custom_call.1} parent=1 // pred_fallthru
      _
    // Predicated region
    $region42: #{tpu_custom_call.1} parent=1 // pred_check
      _
    $region43: #{tpu_custom_call.1} parent=1 // pred_check_branch
      %102 = sbr.rel (0) target = $region45
    $region44: #{tpu_custom_call.1} parent=1 // pred_region
      _
    $region45: #{tpu_custom_call.1} parent=1 // pred_fallthru
      _
    // Predicated region
    $region46: #{tpu_custom_call.1} parent=1 // pred_check
      _
    $region47: #{tpu_custom_call.1} parent=1 // pred_check_branch
      %104 = sbr.rel (0) target = $region49
    $region48: #{tpu_custom_call.1} parent=1 // pred_region
      %s106 = ssub.s32 2048, 2048
      %107 = vsyncadd [#allocation12], %s106
      %s108 = sshll.u32 [#allocation13], 4
      %s109 = int_to_ptr.vmem [resolvable:$true] %s108
      %114 = dma.hbm_to_vmem [thread:$0]  %s11, 2048, %s109, [#allocation12], 128, 128, 8
    $region49: #{tpu_custom_call.1} parent=1 // pred_fallthru
      _
    // Predicated region
    $region50: #{tpu_custom_call.1} parent=1 // pred_check
      _
    $region51: #{tpu_custom_call.1} parent=1 // pred_check_branch
      %116 = sbr.rel (0) target = $region53
    $region52: #{tpu_custom_call.1} parent=1 // pred_region
      _
    $region53: #{tpu_custom_call.1} parent=1 // pred_fallthru
      _
    // Predicated region
    $region54: #{tpu_custom_call.1} parent=1 // pred_check
      _
    $region55: #{tpu_custom_call.1} parent=1 // pred_check_branch
      %118 = sbr.rel (0) target = $region57
    $region56: #{tpu_custom_call.1} parent=1 // pred_region
      %119 = dma.done [#allocation3], 128
    $region57: #{tpu_custom_call.1} parent=1 // pred_fallthru
      _
    // Predicated region
    $region58: #{tpu_custom_call.1} parent=1 // pred_check
      _
    $region59: #{tpu_custom_call.1} parent=1 // pred_check_branch
      %121 = sbr.rel (0) target = $region61
    $region60: #{tpu_custom_call.1} parent=1 // pred_region
      %122 = dma.done [#allocation6], 2048
    $region61: #{tpu_custom_call.1} parent=1 // pred_fallthru
      _
    // Predicated region
    $region62: #{tpu_custom_call.1} parent=1 // pred_check
      _
    $region63: #{tpu_custom_call.1} parent=1 // pred_check_branch
      %124 = sbr.rel (0) target = $region65
    $region64: #{tpu_custom_call.1} parent=1 // pred_region
      %125 = dma.done [#allocation6], 2048
    $region65: #{tpu_custom_call.1} parent=1 // pred_fallthru
      _
    // Predicated region
    $region66: #{tpu_custom_call.1} parent=1 // pred_check
      _
    $region67: #{tpu_custom_call.1} parent=1 // pred_check_branch
      %127 = sbr.rel (0) target = $region69
    $region68: #{tpu_custom_call.1} parent=1 // pred_region
      %128 = dma.done [#allocation9], 2048
    $region69: #{tpu_custom_call.1} parent=1 // pred_fallthru
      _
    // Predicated region
    $region70: #{tpu_custom_call.1} parent=1 // pred_check
      _
    $region71: #{tpu_custom_call.1} parent=1 // pred_check_branch
      %130 = sbr.rel (0) target = $region73
    $region72: #{tpu_custom_call.1} parent=1 // pred_region
      %131 = dma.done [#allocation9], 2048
    $region73: #{tpu_custom_call.1} parent=1 // pred_fallthru
      _
    // Predicated region
    $region74: #{tpu_custom_call.1} parent=1 // pred_check
      _
    $region75: #{tpu_custom_call.1} parent=1 // pred_check_branch
      %133 = sbr.rel (0) target = $region77
    $region76: #{tpu_custom_call.1} parent=1 // pred_region
      %134 = dma.done [#allocation12], 2048
    $region77: #{tpu_custom_call.1} parent=1 // pred_fallthru
      _
    // Predicated region
    $region78: #{tpu_custom_call.1} parent=1 // pred_check
      _
    $region79: #{tpu_custom_call.1} parent=1 // pred_check_branch
      %136 = sbr.rel (0) target = $region81
    $region80: #{tpu_custom_call.1} parent=1 // pred_region
      %137 = dma.done [#allocation12], 2048
    $region81: #{tpu_custom_call.1} parent=1 // pred_fallthru
      _
    %v138 = vld [vmem:[#allocation2] sm:$0xff]
    %v139 = vld [vmem:[#allocation5] sm:$0xff]
    %v140 = vld [vmem:[#allocation5 + $0x8] sm:$0xff]
    %v141 = vld [vmem:[#allocation5 + $0x10] sm:$0xff]
    %v142 = vld [vmem:[#allocation5 + $0x18] sm:$0xff]
    %v143 = vld [vmem:[#allocation5 + $0x20] sm:$0xff]
    %v144 = vld [vmem:[#allocation5 + $0x28] sm:$0xff]
    %v145 = vld [vmem:[#allocation5 + $0x30] sm:$0xff]
    %v146 = vld [vmem:[#allocation5 + $0x38] sm:$0xff]
    %v147 = vld [vmem:[#allocation5 + $0x40] sm:$0xff]
    %v148 = vld [vmem:[#allocation5 + $0x48] sm:$0xff]
    %v149 = vld [vmem:[#allocation5 + $0x50] sm:$0xff]
    %v150 = vld [vmem:[#allocation5 + $0x58] sm:$0xff]
    %v151 = vld [vmem:[#allocation5 + $0x60] sm:$0xff]
    %v152 = vld [vmem:[#allocation5 + $0x68] sm:$0xff]
    %v153 = vld [vmem:[#allocation5 + $0x70] sm:$0xff]
    %v154 = vld [vmem:[#allocation5 + $0x78] sm:$0xff]
    %v155 = vld [vmem:[%s2] sm:$0x1]
    %v157 = vlaneseq
    %v158 = vshrl.u32 %v157, 7
    %v159 = vsub.s32 0, %v158
    %v160 = vrot.slane %v155, %v159
    %162 = vmatprep.subr.mxu0 0.0
    %163 = vmatpush1.msra.mxu0 %v139
    %164 = vmatprep.subr.mxu0 0.0
    %165 = vmatpush1.msra.mxu0 %v140
    %166 = vmatprep.subr.mxu0 0.0
    %167 = vmatpush1.msra.mxu0 %v141
    %168 = vmatprep.subr.mxu0 0.0
    %169 = vmatpush1.msra.mxu0 %v142
    %170 = vmatprep.subr.mxu0 0.0
    %171 = vmatpush1.msra.mxu0 %v143
    %172 = vmatprep.subr.mxu0 0.0
    %173 = vmatpush1.msra.mxu0 %v144
    %174 = vmatprep.subr.mxu0 0.0
    %175 = vmatpush1.msra.mxu0 %v145
    %176 = vmatprep.subr.mxu0 0.0
    %177 = vmatpush1.msra.mxu0 %v146
    %178 = vmatprep.subr.mxu0 0.0
    %179 = vmatpush1.msra.mxu0 %v147
    %180 = vmatprep.subr.mxu0 0.0
    %181 = vmatpush1.msra.mxu0 %v148
    %182 = vmatprep.subr.mxu0 0.0
    %183 = vmatpush1.msra.mxu0 %v149
    %184 = vmatprep.subr.mxu0 0.0
    %185 = vmatpush1.msra.mxu0 %v150
    %186 = vmatprep.subr.mxu0 0.0
    %187 = vmatpush1.msra.mxu0 %v151
    %188 = vmatprep.subr.mxu0 0.0
    %189 = vmatpush1.msra.mxu0 %v152
    %190 = vmatprep.subr.mxu0 0.0
    %191 = vmatpush1.msra.mxu0 %v153
    %192 = vmatprep.subr.mxu0 0.0
    %193 = vmatpush1.msra.mxu0 %v154
    %194 = vmatprep.subr.mxu0 0.0
    %195 = vmatpush1.msra.mxu0 0.0
    %196 = vmatprep.subr.mxu0 0.0
    %197 = vmatpush1.msra.mxu0 0.0
    %198 = vmatprep.subr.mxu0 0.0
    %199 = vmatpush1.msra.mxu0 0.0
    %200 = vmatprep.subr.mxu0 0.0
    %201 = vmatpush1.msra.mxu0 0.0
    %202 = vmatprep.subr.mxu0 0.0
    %203 = vmatpush1.msra.mxu0 0.0
    %204 = vmatprep.subr.mxu0 0.0
    %205 = vmatpush1.msra.mxu0 0.0
    %206 = vmatprep.subr.mxu0 0.0
    %207 = vmatpush1.msra.mxu0 0.0
    %208 = vmatprep.subr.mxu0 0.0
    %209 = vmatpush1.msra.mxu0 0.0
    %210 = vmatprep.subr.mxu0 0.0
    %211 = vmatpush1.msra.mxu0 0.0
    %212 = vmatprep.subr.mxu0 0.0
    %213 = vmatpush1.msra.mxu0 0.0
    %214 = vmatprep.subr.mxu0 0.0
    %215 = vmatpush1.msra.mxu0 0.0
    %216 = vmatprep.subr.mxu0 0.0
    %217 = vmatpush1.msra.mxu0 0.0
    %218 = vmatprep.subr.mxu0 0.0
    %219 = vmatpush1.msra.mxu0 0.0
    %220 = vmatprep.subr.mxu0 0.0
    %221 = vmatpush1.msra.mxu0 0.0
    %222 = vmatprep.subr.mxu0 0.0
    %223 = vmatpush1.msra.mxu0 0.0
    %224 = vmatprep.subr.mxu0 0.0
    %225 = vmatpush1.msra.mxu0 0.0
    %226 = vmatprep.mubr.f32.mxu0 0.0
    %227 = vmatmul.mubr.f32.gmra.mrb[0].mxu0 %v138
    %v228 = vpop.f32.mrb[0].mxu0
    %v229 = vadd.f32 %v160, %v228
    %v230 = vpop.f32.mrb[0].mxu0
    %231 = vdwg.mxu0
    %v232 = vmin.f32 %v229, 20.0
    %v233 = vmul.f32 %v232, 1.442695
    %v234 = vpow.pop %v233
    %v235 = vadd.f32 %v234, 1.0
    %v236 = vmul.f32 %v235, %v235
    %v237 = vadd.f32 %v236, 1.0
    %v238 = vmul.f32 %v229, 2.0
    %v239 = vrcp.pop %v237
    %v240 = vmul.f32 %v238, %v239
    %v241 = vsub.f32 %v229, %v240
    %vm242 = vcmp.gt.f32.partialorder %v229, 20.0
    %v243 = vsel %vm242, %v229, %v241
    %v244 = vld [vmem:[#allocation7] sm:$0xff]
    %v245 = vld [vmem:[#allocation7 + $0x8] sm:$0xff]
    %v246 = vld [vmem:[#allocation7 + $0x10] sm:$0xff]
    %v247 = vld [vmem:[#allocation7 + $0x18] sm:$0xff]
    %v248 = vld [vmem:[#allocation7 + $0x20] sm:$0xff]
    %v249 = vld [vmem:[#allocation7 + $0x28] sm:$0xff]
    %v250 = vld [vmem:[#allocation7 + $0x30] sm:$0xff]
    %v251 = vld [vmem:[#allocation7 + $0x38] sm:$0xff]
    %v252 = vld [vmem:[#allocation7 + $0x40] sm:$0xff]
    %v253 = vld [vmem:[#allocation7 + $0x48] sm:$0xff]
    %v254 = vld [vmem:[#allocation7 + $0x50] sm:$0xff]
    %v255 = vld [vmem:[#allocation7 + $0x58] sm:$0xff]
    %v256 = vld [vmem:[#allocation7 + $0x60] sm:$0xff]
    %v257 = vld [vmem:[#allocation7 + $0x68] sm:$0xff]
    %v258 = vld [vmem:[#allocation7 + $0x70] sm:$0xff]
    %v259 = vld [vmem:[#allocation7 + $0x78] sm:$0xff]
    %v260 = vld [vmem:[%s4] sm:$0x1]
    %v262 = vlaneseq
    %v263 = vshrl.u32 %v262, 7
    %v264 = vsub.s32 0, %v263
    %v265 = vrot.slane %v260, %v264
    %267 = vmatprep.subr.mxu0 0.0
    %268 = vmatpush1.msra.mxu0 %v244
    %269 = vmatprep.subr.mxu0 0.0
    %270 = vmatpush1.msra.mxu0 %v245
    %271 = vmatprep.subr.mxu0 0.0
    %272 = vmatpush1.msra.mxu0 %v246
    %273 = vmatprep.subr.mxu0 0.0
    %274 = vmatpush1.msra.mxu0 %v247
    %275 = vmatprep.subr.mxu0 0.0
    %276 = vmatpush1.msra.mxu0 %v248
    %277 = vmatprep.subr.mxu0 0.0
    %278 = vmatpush1.msra.mxu0 %v249
    %279 = vmatprep.subr.mxu0 0.0
    %280 = vmatpush1.msra.mxu0 %v250
    %281 = vmatprep.subr.mxu0 0.0
    %282 = vmatpush1.msra.mxu0 %v251
    %283 = vmatprep.subr.mxu0 0.0
    %284 = vmatpush1.msra.mxu0 %v252
    %285 = vmatprep.subr.mxu0 0.0
    %286 = vmatpush1.msra.mxu0 %v253
    %287 = vmatprep.subr.mxu0 0.0
    %288 = vmatpush1.msra.mxu0 %v254
    %289 = vmatprep.subr.mxu0 0.0
    %290 = vmatpush1.msra.mxu0 %v255
    %291 = vmatprep.subr.mxu0 0.0
    %292 = vmatpush1.msra.mxu0 %v256
    %293 = vmatprep.subr.mxu0 0.0
    %294 = vmatpush1.msra.mxu0 %v257
    %295 = vmatprep.subr.mxu0 0.0
    %296 = vmatpush1.msra.mxu0 %v258
    %297 = vmatprep.subr.mxu0 0.0
    %298 = vmatpush1.msra.mxu0 %v259
    %299 = vmatprep.subr.mxu0 0.0
    %300 = vmatpush1.msra.mxu0 0.0
    %301 = vmatprep.subr.mxu0 0.0
    %302 = vmatpush1.msra.mxu0 0.0
    %303 = vmatprep.subr.mxu0 0.0
    %304 = vmatpush1.msra.mxu0 0.0
    %305 = vmatprep.subr.mxu0 0.0
    %306 = vmatpush1.msra.mxu0 0.0
    %307 = vmatprep.subr.mxu0 0.0
    %308 = vmatpush1.msra.mxu0 0.0
    %309 = vmatprep.subr.mxu0 0.0
    %310 = vmatpush1.msra.mxu0 0.0
    %311 = vmatprep.subr.mxu0 0.0
    %312 = vmatpush1.msra.mxu0 0.0
    %313 = vmatprep.subr.mxu0 0.0
    %314 = vmatpush1.msra.mxu0 0.0
    %315 = vmatprep.subr.mxu0 0.0
    %316 = vmatpush1.msra.mxu0 0.0
    %317 = vmatprep.subr.mxu0 0.0
    %318 = vmatpush1.msra.mxu0 0.0
    %319 = vmatprep.subr.mxu0 0.0
    %320 = vmatpush1.msra.mxu0 0.0
    %321 = vmatprep.subr.mxu0 0.0
    %322 = vmatpush1.msra.mxu0 0.0
    %323 = vmatprep.subr.mxu0 0.0
    %324 = vmatpush1.msra.mxu0 0.0
    %325 = vmatprep.subr.mxu0 0.0
    %326 = vmatpush1.msra.mxu0 0.0
    %327 = vmatprep.subr.mxu0 0.0
    %328 = vmatpush1.msra.mxu0 0.0
    %329 = vmatprep.subr.mxu0 0.0
    %330 = vmatpush1.msra.mxu0 0.0
    %331 = vmatprep.mubr.f32.mxu0 0.0
    %332 = vmatmul.mubr.f32.gmra.mrb[0].mxu0 %v243
    %v333 = vpop.f32.mrb[0].mxu0
    %v334 = vadd.f32 %v265, %v333
    %v335 = vpop.f32.mrb[0].mxu0
    %336 = vdwg.mxu0
    %v337 = vmin.f32 %v334, 20.0
    %v338 = vmul.f32 %v337, 1.442695
    %v339 = vpow.pop %v338
    %v340 = vadd.f32 %v339, 1.0
    %v341 = vmul.f32 %v340, %v340
    %v342 = vadd.f32 %v341, 1.0
    %v343 = vmul.f32 %v334, 2.0
    %v344 = vrcp.pop %v342
    %v345 = vmul.f32 %v343, %v344
    %v346 = vsub.f32 %v334, %v345
    %vm347 = vcmp.gt.f32.partialorder %v334, 20.0
    %v348 = vsel %vm347, %v334, %v346
    %v349 = vld [vmem:[#allocation8] sm:$0xff]
    %v350 = vld [vmem:[#allocation8 + $0x8] sm:$0xff]
    %v351 = vld [vmem:[#allocation8 + $0x10] sm:$0xff]
    %v352 = vld [vmem:[#allocation8 + $0x18] sm:$0xff]
    %v353 = vld [vmem:[#allocation8 + $0x20] sm:$0xff]
    %v354 = vld [vmem:[#allocation8 + $0x28] sm:$0xff]
    %v355 = vld [vmem:[#allocation8 + $0x30] sm:$0xff]
    %v356 = vld [vmem:[#allocation8 + $0x38] sm:$0xff]
    %v357 = vld [vmem:[#allocation8 + $0x40] sm:$0xff]
    %v358 = vld [vmem:[#allocation8 + $0x48] sm:$0xff]
    %v359 = vld [vmem:[#allocation8 + $0x50] sm:$0xff]
    %v360 = vld [vmem:[#allocation8 + $0x58] sm:$0xff]
    %v361 = vld [vmem:[#allocation8 + $0x60] sm:$0xff]
    %v362 = vld [vmem:[#allocation8 + $0x68] sm:$0xff]
    %v363 = vld [vmem:[#allocation8 + $0x70] sm:$0xff]
    %v364 = vld [vmem:[#allocation8 + $0x78] sm:$0xff]
    %v365 = vld [vmem:[%s6] sm:$0x1]
    %v367 = vlaneseq
    %v368 = vshrl.u32 %v367, 7
    %v369 = vsub.s32 0, %v368
    %v370 = vrot.slane %v365, %v369
    %372 = vmatprep.subr.mxu0 0.0
    %373 = vmatpush1.msra.mxu0 %v349
    %374 = vmatprep.subr.mxu0 0.0
    %375 = vmatpush1.msra.mxu0 %v350
    %376 = vmatprep.subr.mxu0 0.0
    %377 = vmatpush1.msra.mxu0 %v351
    %378 = vmatprep.subr.mxu0 0.0
    %379 = vmatpush1.msra.mxu0 %v352
    %380 = vmatprep.subr.mxu0 0.0
    %381 = vmatpush1.msra.mxu0 %v353
    %382 = vmatprep.subr.mxu0 0.0
    %383 = vmatpush1.msra.mxu0 %v354
    %384 = vmatprep.subr.mxu0 0.0
    %385 = vmatpush1.msra.mxu0 %v355
    %386 = vmatprep.subr.mxu0 0.0
    %387 = vmatpush1.msra.mxu0 %v356
    %388 = vmatprep.subr.mxu0 0.0
    %389 = vmatpush1.msra.mxu0 %v357
    %390 = vmatprep.subr.mxu0 0.0
    %391 = vmatpush1.msra.mxu0 %v358
    %392 = vmatprep.subr.mxu0 0.0
    %393 = vmatpush1.msra.mxu0 %v359
    %394 = vmatprep.subr.mxu0 0.0
    %395 = vmatpush1.msra.mxu0 %v360
    %396 = vmatprep.subr.mxu0 0.0
    %397 = vmatpush1.msra.mxu0 %v361
    %398 = vmatprep.subr.mxu0 0.0
    %399 = vmatpush1.msra.mxu0 %v362
    %400 = vmatprep.subr.mxu0 0.0
    %401 = vmatpush1.msra.mxu0 %v363
    %402 = vmatprep.subr.mxu0 0.0
    %403 = vmatpush1.msra.mxu0 %v364
    %404 = vmatprep.subr.mxu0 0.0
    %405 = vmatpush1.msra.mxu0 0.0
    %406 = vmatprep.subr.mxu0 0.0
    %407 = vmatpush1.msra.mxu0 0.0
    %408 = vmatprep.subr.mxu0 0.0
    %409 = vmatpush1.msra.mxu0 0.0
    %410 = vmatprep.subr.mxu0 0.0
    %411 = vmatpush1.msra.mxu0 0.0
    %412 = vmatprep.subr.mxu0 0.0
    %413 = vmatpush1.msra.mxu0 0.0
    %414 = vmatprep.subr.mxu0 0.0
    %415 = vmatpush1.msra.mxu0 0.0
    %416 = vmatprep.subr.mxu0 0.0
    %417 = vmatpush1.msra.mxu0 0.0
    %418 = vmatprep.subr.mxu0 0.0
    %419 = vmatpush1.msra.mxu0 0.0
    %420 = vmatprep.subr.mxu0 0.0
    %421 = vmatpush1.msra.mxu0 0.0
    %422 = vmatprep.subr.mxu0 0.0
    %423 = vmatpush1.msra.mxu0 0.0
    %424 = vmatprep.subr.mxu0 0.0
    %425 = vmatpush1.msra.mxu0 0.0
    %426 = vmatprep.subr.mxu0 0.0
    %427 = vmatpush1.msra.mxu0 0.0
    %428 = vmatprep.subr.mxu0 0.0
    %429 = vmatpush1.msra.mxu0 0.0
    %430 = vmatprep.subr.mxu0 0.0
    %431 = vmatpush1.msra.mxu0 0.0
    %432 = vmatprep.subr.mxu0 0.0
    %433 = vmatpush1.msra.mxu0 0.0
    %434 = vmatprep.subr.mxu0 0.0
    %435 = vmatpush1.msra.mxu0 0.0
    %436 = vmatprep.mubr.f32.mxu0 0.0
    %437 = vmatmul.mubr.f32.gmra.mrb[0].mxu0 %v348
    %v438 = vpop.f32.mrb[0].mxu0
    %v439 = vadd.f32 %v370, %v438
    %v440 = vpop.f32.mrb[0].mxu0
    %441 = vdwg.mxu0
    %v442 = vmin.f32 %v439, 20.0
    %v443 = vmul.f32 %v442, 1.442695
    %v444 = vpow.pop %v443
    %v445 = vadd.f32 %v444, 1.0
    %v446 = vmul.f32 %v445, %v445
    %v447 = vadd.f32 %v446, 1.0
    %v448 = vmul.f32 %v439, 2.0
    %v449 = vrcp.pop %v447
    %v450 = vmul.f32 %v448, %v449
    %v451 = vsub.f32 %v439, %v450
    %vm452 = vcmp.gt.f32.partialorder %v439, 20.0
    %v453 = vsel %vm452, %v439, %v451
    %v454 = vld [vmem:[#allocation10] sm:$0xff]
    %v455 = vld [vmem:[#allocation10 + $0x8] sm:$0xff]
    %v456 = vld [vmem:[#allocation10 + $0x10] sm:$0xff]
    %v457 = vld [vmem:[#allocation10 + $0x18] sm:$0xff]
    %v458 = vld [vmem:[#allocation10 + $0x20] sm:$0xff]
    %v459 = vld [vmem:[#allocation10 + $0x28] sm:$0xff]
    %v460 = vld [vmem:[#allocation10 + $0x30] sm:$0xff]
    %v461 = vld [vmem:[#allocation10 + $0x38] sm:$0xff]
    %v462 = vld [vmem:[#allocation10 + $0x40] sm:$0xff]
    %v463 = vld [vmem:[#allocation10 + $0x48] sm:$0xff]
    %v464 = vld [vmem:[#allocation10 + $0x50] sm:$0xff]
    %v465 = vld [vmem:[#allocation10 + $0x58] sm:$0xff]
    %v466 = vld [vmem:[#allocation10 + $0x60] sm:$0xff]
    %v467 = vld [vmem:[#allocation10 + $0x68] sm:$0xff]
    %v468 = vld [vmem:[#allocation10 + $0x70] sm:$0xff]
    %v469 = vld [vmem:[#allocation10 + $0x78] sm:$0xff]
    %v470 = vld [vmem:[%s8] sm:$0x1]
    %v472 = vlaneseq
    %v473 = vshrl.u32 %v472, 7
    %v474 = vsub.s32 0, %v473
    %v475 = vrot.slane %v470, %v474
    %477 = vmatprep.subr.mxu0 0.0
    %478 = vmatpush1.msra.mxu0 %v454
    %479 = vmatprep.subr.mxu0 0.0
    %480 = vmatpush1.msra.mxu0 %v455
    %481 = vmatprep.subr.mxu0 0.0
    %482 = vmatpush1.msra.mxu0 %v456
    %483 = vmatprep.subr.mxu0 0.0
    %484 = vmatpush1.msra.mxu0 %v457
    %485 = vmatprep.subr.mxu0 0.0
    %486 = vmatpush1.msra.mxu0 %v458
    %487 = vmatprep.subr.mxu0 0.0
    %488 = vmatpush1.msra.mxu0 %v459
    %489 = vmatprep.subr.mxu0 0.0
    %490 = vmatpush1.msra.mxu0 %v460
    %491 = vmatprep.subr.mxu0 0.0
    %492 = vmatpush1.msra.mxu0 %v461
    %493 = vmatprep.subr.mxu0 0.0
    %494 = vmatpush1.msra.mxu0 %v462
    %495 = vmatprep.subr.mxu0 0.0
    %496 = vmatpush1.msra.mxu0 %v463
    %497 = vmatprep.subr.mxu0 0.0
    %498 = vmatpush1.msra.mxu0 %v464
    %499 = vmatprep.subr.mxu0 0.0
    %500 = vmatpush1.msra.mxu0 %v465
    %501 = vmatprep.subr.mxu0 0.0
    %502 = vmatpush1.msra.mxu0 %v466
    %503 = vmatprep.subr.mxu0 0.0
    %504 = vmatpush1.msra.mxu0 %v467
    %505 = vmatprep.subr.mxu0 0.0
    %506 = vmatpush1.msra.mxu0 %v468
    %507 = vmatprep.subr.mxu0 0.0
    %508 = vmatpush1.msra.mxu0 %v469
    %509 = vmatprep.subr.mxu0 0.0
    %510 = vmatpush1.msra.mxu0 0.0
    %511 = vmatprep.subr.mxu0 0.0
    %512 = vmatpush1.msra.mxu0 0.0
    %513 = vmatprep.subr.mxu0 0.0
    %514 = vmatpush1.msra.mxu0 0.0
    %515 = vmatprep.subr.mxu0 0.0
    %516 = vmatpush1.msra.mxu0 0.0
    %517 = vmatprep.subr.mxu0 0.0
    %518 = vmatpush1.msra.mxu0 0.0
    %519 = vmatprep.subr.mxu0 0.0
    %520 = vmatpush1.msra.mxu0 0.0
    %521 = vmatprep.subr.mxu0 0.0
    %522 = vmatpush1.msra.mxu0 0.0
    %523 = vmatprep.subr.mxu0 0.0
    %524 = vmatpush1.msra.mxu0 0.0
    %525 = vmatprep.subr.mxu0 0.0
    %526 = vmatpush1.msra.mxu0 0.0
    %527 = vmatprep.subr.mxu0 0.0
    %528 = vmatpush1.msra.mxu0 0.0
    %529 = vmatprep.subr.mxu0 0.0
    %530 = vmatpush1.msra.mxu0 0.0
    %531 = vmatprep.subr.mxu0 0.0
    %532 = vmatpush1.msra.mxu0 0.0
    %533 = vmatprep.subr.mxu0 0.0
    %534 = vmatpush1.msra.mxu0 0.0
    %535 = vmatprep.subr.mxu0 0.0
    %536 = vmatpush1.msra.mxu0 0.0
    %537 = vmatprep.subr.mxu0 0.0
    %538 = vmatpush1.msra.mxu0 0.0
    %539 = vmatprep.subr.mxu0 0.0
    %540 = vmatpush1.msra.mxu0 0.0
    %541 = vmatprep.mubr.f32.mxu0 0.0
    %542 = vmatmul.mubr.f32.gmra.mrb[0].mxu0 %v453
    %v543 = vpop.f32.mrb[0].mxu0
    %v544 = vadd.f32 %v475, %v543
    %v545 = vpop.f32.mrb[0].mxu0
    %546 = vdwg.mxu0
    %v547 = vmin.f32 %v544, 20.0
    %v548 = vmul.f32 %v547, 1.442695
    %v549 = vpow.pop %v548
    %v550 = vadd.f32 %v549, 1.0
    %v551 = vmul.f32 %v550, %v550
    %v552 = vadd.f32 %v551, 1.0
    %v553 = vmul.f32 %v544, 2.0
    %v554 = vrcp.pop %v552
    %v555 = vmul.f32 %v553, %v554
    %v556 = vsub.f32 %v544, %v555
    %vm557 = vcmp.gt.f32.partialorder %v544, 20.0
    %v558 = vsel %vm557, %v544, %v556
    %v559 = vld [vmem:[#allocation11] sm:$0xff]
    %v560 = vld [vmem:[#allocation11 + $0x8] sm:$0xff]
    %v561 = vld [vmem:[#allocation11 + $0x10] sm:$0xff]
    %v562 = vld [vmem:[#allocation11 + $0x18] sm:$0xff]
    %v563 = vld [vmem:[#allocation11 + $0x20] sm:$0xff]
    %v564 = vld [vmem:[#allocation11 + $0x28] sm:$0xff]
    %v565 = vld [vmem:[#allocation11 + $0x30] sm:$0xff]
    %v566 = vld [vmem:[#allocation11 + $0x38] sm:$0xff]
    %v567 = vld [vmem:[#allocation11 + $0x40] sm:$0xff]
    %v568 = vld [vmem:[#allocation11 + $0x48] sm:$0xff]
    %v569 = vld [vmem:[#allocation11 + $0x50] sm:$0xff]
    %v570 = vld [vmem:[#allocation11 + $0x58] sm:$0xff]
    %v571 = vld [vmem:[#allocation11 + $0x60] sm:$0xff]
    %v572 = vld [vmem:[#allocation11 + $0x68] sm:$0xff]
    %v573 = vld [vmem:[#allocation11 + $0x70] sm:$0xff]
    %v574 = vld [vmem:[#allocation11 + $0x78] sm:$0xff]
    %v575 = vld [vmem:[%s10] sm:$0x1]
    %v577 = vlaneseq
    %v578 = vshrl.u32 %v577, 7
    %v579 = vsub.s32 0, %v578
    %v580 = vrot.slane %v575, %v579
    %582 = vmatprep.subr.mxu0 0.0
    %583 = vmatpush1.msra.mxu0 %v559
    %584 = vmatprep.subr.mxu0 0.0
    %585 = vmatpush1.msra.mxu0 %v560
    %586 = vmatprep.subr.mxu0 0.0
    %587 = vmatpush1.msra.mxu0 %v561
    %588 = vmatprep.subr.mxu0 0.0
    %589 = vmatpush1.msra.mxu0 %v562
    %590 = vmatprep.subr.mxu0 0.0
    %591 = vmatpush1.msra.mxu0 %v563
    %592 = vmatprep.subr.mxu0 0.0
    %593 = vmatpush1.msra.mxu0 %v564
    %594 = vmatprep.subr.mxu0 0.0
    %595 = vmatpush1.msra.mxu0 %v565
    %596 = vmatprep.subr.mxu0 0.0
    %597 = vmatpush1.msra.mxu0 %v566
    %598 = vmatprep.subr.mxu0 0.0
    %599 = vmatpush1.msra.mxu0 %v567
    %600 = vmatprep.subr.mxu0 0.0
    %601 = vmatpush1.msra.mxu0 %v568
    %602 = vmatprep.subr.mxu0 0.0
    %603 = vmatpush1.msra.mxu0 %v569
    %604 = vmatprep.subr.mxu0 0.0
    %605 = vmatpush1.msra.mxu0 %v570
    %606 = vmatprep.subr.mxu0 0.0
    %607 = vmatpush1.msra.mxu0 %v571
    %608 = vmatprep.subr.mxu0 0.0
    %609 = vmatpush1.msra.mxu0 %v572
    %610 = vmatprep.subr.mxu0 0.0
    %611 = vmatpush1.msra.mxu0 %v573
    %612 = vmatprep.subr.mxu0 0.0
    %613 = vmatpush1.msra.mxu0 %v574
    %614 = vmatprep.subr.mxu0 0.0
    %615 = vmatpush1.msra.mxu0 0.0
    %616 = vmatprep.subr.mxu0 0.0
    %617 = vmatpush1.msra.mxu0 0.0
    %618 = vmatprep.subr.mxu0 0.0
    %619 = vmatpush1.msra.mxu0 0.0
    %620 = vmatprep.subr.mxu0 0.0
    %621 = vmatpush1.msra.mxu0 0.0
    %622 = vmatprep.subr.mxu0 0.0
    %623 = vmatpush1.msra.mxu0 0.0
    %624 = vmatprep.subr.mxu0 0.0
    %625 = vmatpush1.msra.mxu0 0.0
    %626 = vmatprep.subr.mxu0 0.0
    %627 = vmatpush1.msra.mxu0 0.0
    %628 = vmatprep.subr.mxu0 0.0
    %629 = vmatpush1.msra.mxu0 0.0
    %630 = vmatprep.subr.mxu0 0.0
    %631 = vmatpush1.msra.mxu0 0.0
    %632 = vmatprep.subr.mxu0 0.0
    %633 = vmatpush1.msra.mxu0 0.0
    %634 = vmatprep.subr.mxu0 0.0
    %635 = vmatpush1.msra.mxu0 0.0
    %636 = vmatprep.subr.mxu0 0.0
    %637 = vmatpush1.msra.mxu0 0.0
    %638 = vmatprep.subr.mxu0 0.0
    %639 = vmatpush1.msra.mxu0 0.0
    %640 = vmatprep.subr.mxu0 0.0
    %641 = vmatpush1.msra.mxu0 0.0
    %642 = vmatprep.subr.mxu0 0.0
    %643 = vmatpush1.msra.mxu0 0.0
    %644 = vmatprep.subr.mxu0 0.0
    %645 = vmatpush1.msra.mxu0 0.0
    %646 = vmatprep.mubr.f32.mxu0 0.0
    %647 = vmatmul.mubr.f32.gmra.mrb[0].mxu0 %v558
    %v648 = vpop.f32.mrb[0].mxu0
    %v649 = vadd.f32 %v580, %v648
    %v650 = vpop.f32.mrb[0].mxu0
    %651 = vdwg.mxu0
    %v652 = vmin.f32 %v649, 20.0
    %v653 = vmul.f32 %v652, 1.442695
    %v654 = vpow.pop %v653
    %v655 = vadd.f32 %v654, 1.0
    %v656 = vmul.f32 %v655, %v655
    %v657 = vadd.f32 %v656, 1.0
    %v658 = vmul.f32 %v649, 2.0
    %v659 = vrcp.pop %v657
    %v660 = vmul.f32 %v658, %v659
    %v661 = vsub.f32 %v649, %v660
    %vm662 = vcmp.gt.f32.partialorder %v649, 20.0
    %v663 = vsel %vm662, %v649, %v661
    %v664 = vld [vmem:[#allocation13] sm:$0xff]
    %v665 = vld [vmem:[#allocation13 + $0x8] sm:$0xff]
    %v666 = vld [vmem:[#allocation13 + $0x10] sm:$0xff]
    %v667 = vld [vmem:[#allocation13 + $0x18] sm:$0xff]
    %v668 = vld [vmem:[#allocation13 + $0x20] sm:$0xff]
    %v669 = vld [vmem:[#allocation13 + $0x28] sm:$0xff]
    %v670 = vld [vmem:[#allocation13 + $0x30] sm:$0xff]
    %v671 = vld [vmem:[#allocation13 + $0x38] sm:$0xff]
    %v672 = vld [vmem:[#allocation13 + $0x40] sm:$0xff]
    %v673 = vld [vmem:[#allocation13 + $0x48] sm:$0xff]
    %v674 = vld [vmem:[#allocation13 + $0x50] sm:$0xff]
    %v675 = vld [vmem:[#allocation13 + $0x58] sm:$0xff]
    %v676 = vld [vmem:[#allocation13 + $0x60] sm:$0xff]
    %v677 = vld [vmem:[#allocation13 + $0x68] sm:$0xff]
    %v678 = vld [vmem:[#allocation13 + $0x70] sm:$0xff]
    %v679 = vld [vmem:[#allocation13 + $0x78] sm:$0xff]
    %v680 = vld [vmem:[%s12] sm:$0x1]
    %v682 = vlaneseq
    %v683 = vshrl.u32 %v682, 7
    %v684 = vsub.s32 0, %v683
    %v685 = vrot.slane %v680, %v684
    %687 = vmatprep.subr.mxu0 0.0
    %688 = vmatpush1.msra.mxu0 %v664
    %689 = vmatprep.subr.mxu0 0.0
    %690 = vmatpush1.msra.mxu0 %v665
    %691 = vmatprep.subr.mxu0 0.0
    %692 = vmatpush1.msra.mxu0 %v666
    %693 = vmatprep.subr.mxu0 0.0
    %694 = vmatpush1.msra.mxu0 %v667
    %695 = vmatprep.subr.mxu0 0.0
    %696 = vmatpush1.msra.mxu0 %v668
    %697 = vmatprep.subr.mxu0 0.0
    %698 = vmatpush1.msra.mxu0 %v669
    %699 = vmatprep.subr.mxu0 0.0
    %700 = vmatpush1.msra.mxu0 %v670
    %701 = vmatprep.subr.mxu0 0.0
    %702 = vmatpush1.msra.mxu0 %v671
    %703 = vmatprep.subr.mxu0 0.0
    %704 = vmatpush1.msra.mxu0 %v672
    %705 = vmatprep.subr.mxu0 0.0
    %706 = vmatpush1.msra.mxu0 %v673
    %707 = vmatprep.subr.mxu0 0.0
    %708 = vmatpush1.msra.mxu0 %v674
    %709 = vmatprep.subr.mxu0 0.0
    %710 = vmatpush1.msra.mxu0 %v675
    %711 = vmatprep.subr.mxu0 0.0
    %712 = vmatpush1.msra.mxu0 %v676
    %713 = vmatprep.subr.mxu0 0.0
    %714 = vmatpush1.msra.mxu0 %v677
    %715 = vmatprep.subr.mxu0 0.0
    %716 = vmatpush1.msra.mxu0 %v678
    %717 = vmatprep.subr.mxu0 0.0
    %718 = vmatpush1.msra.mxu0 %v679
    %719 = vmatprep.subr.mxu0 0.0
    %720 = vmatpush1.msra.mxu0 0.0
    %721 = vmatprep.subr.mxu0 0.0
    %722 = vmatpush1.msra.mxu0 0.0
    %723 = vmatprep.subr.mxu0 0.0
    %724 = vmatpush1.msra.mxu0 0.0
    %725 = vmatprep.subr.mxu0 0.0
    %726 = vmatpush1.msra.mxu0 0.0
    %727 = vmatprep.subr.mxu0 0.0
    %728 = vmatpush1.msra.mxu0 0.0
    %729 = vmatprep.subr.mxu0 0.0
    %730 = vmatpush1.msra.mxu0 0.0
    %731 = vmatprep.subr.mxu0 0.0
    %732 = vmatpush1.msra.mxu0 0.0
    %733 = vmatprep.subr.mxu0 0.0
    %734 = vmatpush1.msra.mxu0 0.0
    %735 = vmatprep.subr.mxu0 0.0
    %736 = vmatpush1.msra.mxu0 0.0
    %737 = vmatprep.subr.mxu0 0.0
    %738 = vmatpush1.msra.mxu0 0.0
    %739 = vmatprep.subr.mxu0 0.0
    %740 = vmatpush1.msra.mxu0 0.0
    %741 = vmatprep.subr.mxu0 0.0
    %742 = vmatpush1.msra.mxu0 0.0
    %743 = vmatprep.subr.mxu0 0.0
    %744 = vmatpush1.msra.mxu0 0.0
    %745 = vmatprep.subr.mxu0 0.0
    %746 = vmatpush1.msra.mxu0 0.0
    %747 = vmatprep.subr.mxu0 0.0
    %748 = vmatpush1.msra.mxu0 0.0
    %749 = vmatprep.subr.mxu0 0.0
    %750 = vmatpush1.msra.mxu0 0.0
    %751 = vmatprep.mubr.f32.mxu0 0.0
    %752 = vmatmul.mubr.f32.gmra.mrb[0].mxu0 %v663
    %v753 = vpop.f32.mrb[0].mxu0
    %v754 = vadd.f32 %v685, %v753
    %v755 = vpop.f32.mrb[0].mxu0
    %756 = vdwg.mxu0
    %757 = vst [vmem:[#allocation14] sm:$0xff] %v754
    // Predicated region
    $region82: #{tpu_custom_call.1} parent=1 // pred_check
      _
    $region83: #{tpu_custom_call.1} parent=1 // pred_check_branch
      %759 = sbr.rel (0) target = $region85
    $region84: #{tpu_custom_call.1} parent=1 // pred_region
      %s761 = ssub.s32 128, 128
      %762 = vsyncadd [#allocation4], %s761
      %s764 = sshll.u32 [#allocation14], 4
      %s765 = int_to_ptr.vmem [resolvable:$true] %s764
      %767 = dma.vmem_to_hbm [thread:$0]  %s765, 128, %s13, [#allocation4]
    $region85: #{tpu_custom_call.1} parent=1 // pred_fallthru
      _
    // Predicated region
    $region86: #{tpu_custom_call.1} parent=1 // pred_check
      _
    $region87: #{tpu_custom_call.1} parent=1 // pred_check_branch
      %769 = sbr.rel (0) target = $region89
    $region88: #{tpu_custom_call.1} parent=1 // pred_region
      %770 = dma.done [#allocation4], 128
    $region89: #{tpu_custom_call.1} parent=1 // pred_fallthru
      _
    %771 = vsyncpa [#allocation3], 1
    %772 = vsyncpa [#allocation6], 1
    %773 = vsyncpa [#allocation9], 1
    %774 = vsyncpa [#allocation12], 1
    %775 = vsyncpa [#allocation4], 1

</llo_original>
